<compile_context>
chip_gen: v7x
topology: tpu7x:2x2x1
jax: 0.10.0
libtpu: 0.0.40
codegen_flags: <defaults>
</compile_context>

<pallas_src>
import functools
import math

import jax
import jax.numpy as jnp
from jax.experimental import pallas as pl
from jax.experimental.pallas import tpu as pltpu


def _pe_table(seq_len, d_model, dtype=jnp.float32):
    """Sinusoidal positional encodings, shape (seq_len, d_model). Only S rows."""
    assert d_model % 2 == 0, "d_model must be even (same as the PyTorch module)"
    position = jnp.arange(seq_len, dtype=jnp.float32)[:, None]                  # (S, 1)
    div_term = jnp.exp(jnp.arange(0, d_model, 2, dtype=jnp.float32)
                       * (-math.log(10000.0) / d_model))                        # (D/2,)
    angles = position * div_term                                                # (S, D/2)
    pe = jnp.stack([jnp.sin(angles), jnp.cos(angles)], axis=-1)                 # (S, D/2, 2)
    return pe.reshape(seq_len, d_model).astype(dtype)                           # interleaved sin/cos


def _i32(v):
    """Python int (possibly >= 2**31) -> two's-complement int32 constant."""
    return jnp.int32(((int(v) + 2 ** 31) % 2 ** 32) - 2 ** 31)


def _lsr(x, k):
    """Logical shift-right for int32 arrays (arith shift + mask)."""
    return (x >> k) & jnp.int32((1 << (32 - k)) - 1)


def _posenc_kernel(seed_ref, x_ref, pe_ref, o_ref, *,
                   p_drop, training, n_rep, block_rows, n_cols):
    # x_ref/o_ref: (tr, B*D) row-block of x; pe_ref: matching (tr, D) block.
    pe = pe_ref[...]
    if n_rep > 1:
        pe = jnp.tile(pe, (1, n_rep))          # broadcast pe over batch folded into lanes
    y = x_ref[...] + pe

    if training and p_drop > 0.0:
        if p_drop >= 1.0:
            y = jnp.zeros_like(y)
        else:
            # Counter-based hash dropout (lowbias32-style mixer), all int32 ops
            # so it lowers everywhere (no pltpu.prng_*).  gid = global element
            # index -> mask is independent of the chosen tile size.
            rows = jax.lax.broadcasted_iota(jnp.int32, y.shape, 0)
            cols = jax.lax.broadcasted_iota(jnp.int32, y.shape, 1)
            gid = (pl.program_id(0) * block_rows + rows) * n_cols + cols
            key = seed_ref[0] * _i32(0x9E3779B1) + _i32(0x85EBCA6B)
            h = gid ^ key
            h = (h ^ _lsr(h, 16)) * _i32(0x7FEB352D)
            h = (h ^ _lsr(h, 15)) * _i32(0x846CA68B)
            h = h ^ _lsr(h, 16)
            r = h & jnp.int32(0x7FFFFFFF)                       # 31 uniform bits, >= 0
            threshold = jnp.int32(min(int(round(p_drop * 2.0 ** 31)), 2 ** 31 - 1))
            scale = jnp.asarray(1.0 / (1.0 - p_drop), y.dtype)  # inverted dropout
            y = jnp.where(r >= threshold, y * scale, jnp.zeros_like(y))

    o_ref[...] = y


@functools.partial(jax.jit, static_argnames=("dropout", "max_len", "training"))
def positional_encoding(x, seed=0, *, dropout=0.1, max_len=5000, training=False):
    """x: (seq_len, batch, d_model) -> dropout(x + pe[:seq_len]), same shape."""
    S, B, D = x.shape
    assert S <= max_len, "sequence longer than max_len"

    # Free contiguous fold: (S, B, D) -> (S, B*D).  No transpose, no HBM pass.
    W = B * D
    x2 = x.reshape(S, W)
    pe = _pe_table(S, D, x.dtype)                     # (S, D): only 1/B of the x traffic

    # ---- tiling: ~4 MiB row blocks, dtype-native sublane multiple ----------------
    itemsize = jnp.dtype(x.dtype).itemsize
    sub = {4: 8, 2: 16, 1: 32}.get(itemsize, 8)       # f32 / bf16 / int8 native sublanes
    target_bytes = 4 << 20
    rows_fit = max(sub, (target_bytes // max(1, W * itemsize)) // sub * sub)
    tr = min(S, rows_fit)
    if tr >= S and S >= 2 * sub:
        # keep >= 2 grid steps so both TensorCores get work on v7x
        tr = -(-((S + 1) // 2) // sub) * sub
    grid = (pl.cdiv(S, tr),)

    block_bytes = tr * W * itemsize
    vmem_limit = int(min(max(32 << 20,
                             2 * (2 * block_bytes + tr * D * itemsize) + (2 << 20)),
                         40 << 20))

    kernel = functools.partial(
        _posenc_kernel,
        p_drop=float(dropout), training=bool(training),
        n_rep=B, block_rows=tr, n_cols=W)
    seed_arr = jnp.asarray(seed, jnp.int32).reshape(1)

    out2 = pl.pallas_call(
        kernel,
        out_shape=jax.ShapeDtypeStruct((S, W), x.dtype),
        grid=grid,
        in_specs=[
            pl.BlockSpec(memory_space=pltpu.MemorySpace.SMEM),   # seed (1,)
            pl.BlockSpec((tr, W), lambda i: (i, 0)),             # x rows (lane-dense W=B*D)
            pl.BlockSpec((tr, D), lambda i: (i, 0)),             # pe rows
        ],
        out_specs=pl.BlockSpec((tr, W), lambda i: (i, 0)),
        compiler_params=pltpu.CompilerParams(
            dimension_semantics=("parallel",),
            vmem_limit_bytes=vmem_limit,
        ),
    )(seed_arr, x2, pe)

    return out2.reshape(S, B, D)


if __name__ == "__main__":
    key = jax.random.PRNGKey(0)
    S, B, D = 8, 2, 32                                # (seq, batch, d_model)
    x = jax.random.normal(key, (S, B, D), dtype=jnp.float32)
    ref = x + _pe_table(S, D, jnp.float32)[:, None, :]

    # eval-mode forward: dropout is identity, deterministic
    out = jax.block_until_ready(
        positional_encoding(x, dropout=0.1, training=False, seed=0))
    assert out.shape == (S, B, D)
    assert jnp.allclose(out, ref, atol=1e-6), "mismatch vs reference"

    # training-mode forward: inverted dropout via in-kernel hash
    p = 0.1
    out_tr = jax.block_until_ready(
        positional_encoding(x, dropout=p, training=True, seed=123))
    assert out_tr.shape == (S, B, D)
    n_zero = int(jnp.sum(out_tr == 0))
    assert 0 < n_zero < out_tr.size, "dropout mask looks wrong"
    kept = out_tr != 0
    assert jnp.allclose(jnp.where(kept, out_tr * (1.0 - p), 0.0),
                        jnp.where(kept, ref, 0.0), atol=1e-5), "kept values wrong"

    print("KERNEL_OK")
</pallas_src>

<mosaic_0001>
module attributes {stable_mosaic.version = 11 : i64} {
  func.func @_posenc_kernel(%arg0: i32, %arg1: memref<1xi32, #tpu.memory_space<smem>>, %arg2: memref<8x64xf32, #tpu.memory_space<vmem>>, %arg3: memref<8x32xf32, #tpu.memory_space<vmem>>, %arg4: memref<8x64xf32, #tpu.memory_space<vmem>>) attributes {dimension_semantics = [#tpu.dimension_semantics<parallel>], iteration_bounds = array<i64: 1>, scalar_prefetch = 0 : i64, scratch_operands = 0 : i64, tpu.core_type = #tpu.core_type<tc>, window_params = [{transform_indices = @transform_0, window_bounds = array<i64: 1>}, {transform_indices = @transform_1, window_bounds = array<i64: 8, 64>}, {transform_indices = @transform_2, window_bounds = array<i64: 8, 32>}, {transform_indices = @transform_3, window_bounds = array<i64: 8, 64>}]} {
    %c0 = arith.constant 0 : index
    %c0_0 = arith.constant 0 : index
    %0 = vector.load %arg3[%c0, %c0_0] : memref<8x32xf32, #tpu.memory_space<vmem>>, vector<8x32xf32>
    %1 = tpu.concatenate %0, %0 in 1 : vector<8x32xf32>, vector<8x32xf32> -> vector<8x64xf32>
    %c0_1 = arith.constant 0 : index
    %c0_2 = arith.constant 0 : index
    %2 = vector.load %arg2[%c0_1, %c0_2] : memref<8x64xf32, #tpu.memory_space<vmem>>, vector<8x64xf32>
    %3 = arith.addf %2, %1 : vector<8x64xf32>
    %c0_3 = arith.constant 0 : index
    %c0_4 = arith.constant 0 : index
    %4 = vector.load %arg4[%c0_3, %c0_4] : memref<8x64xf32, #tpu.memory_space<vmem>>, vector<8x64xf32>
    tpu.vector_store %arg4[%c0_3, %c0_4], %3 {strides = array<i32>} : memref<8x64xf32, #tpu.memory_space<vmem>>, vector<8x64xf32>,
    return
  }
  func.func @transform_0(%arg0: i32) -> i32 {
    %c0_i32 = arith.constant 0 : i32
    %c0_i32_0 = arith.constant 0 : i32
    return %c0_i32 : i32
  }
  func.func @transform_1(%arg0: i32) -> (i32, i32) {
    %c0_i32 = arith.constant 0 : i32
    %c0_i32_0 = arith.constant 0 : i32
    return %arg0, %c0_i32 : i32, i32
  }
  func.func @transform_2(%arg0: i32) -> (i32, i32) {
    %c0_i32 = arith.constant 0 : i32
    %c0_i32_0 = arith.constant 0 : i32
    return %arg0, %c0_i32 : i32, i32
  }
  func.func @transform_3(%arg0: i32) -> (i32, i32) {
    %c0_i32 = arith.constant 0 : i32
    %c0_i32_0 = arith.constant 0 : i32
    return %arg0, %c0_i32 : i32, i32
  }
}

</mosaic_0001>

<llo_original>
// kernel: positional_encoding.1
$region0: #{positional_encoding.1}
  #allocation0 [shape = 'u32[]', space=smem, size = 0x4, offset = 0x4, fixed_abs, tag = 'smem constant byte address 0x4 - core index']
  #allocation1 [shape = 'u32[144,128]{1,0:T(1,128)}', space=vmem, size = 0x12000, scoped, tag = 'internal scratch']
  #allocation2 [shape = 's32[1]{0:T(128)S(6)}', space=smem, size = 0x200, scoped, tag = 'scoped memory for positional_encoding.1']
  %s0 = inlined_call_operand.<no memory space> [shape: s32[1], index: 0, kind: input, shape index: {}]
  %s1 = inlined_call_operand.vmem [shape: f32[8,64], index: 1, kind: input, shape index: {}]
  %s2 = inlined_call_operand.vmem [shape: f32[8,32], index: 2, kind: input, shape index: {}]
  %s3 = inlined_call_operand.vmem [shape: f32[8,64], index: 3, kind: output, shape index: {}]
  %s4 = sld [smem:[#allocation0]]
  $region22: #{positional_encoding.1} parent=0
    _
  %s6 = ssub.s32 1, %s4
  %s7 = scalar_select 0, %s6, %s4
  %8 = sst [smem:[#allocation2]] %s0
  // Predicated region
  $region2: #{positional_encoding.1} parent=0 // pred_check
    _
  $region3: #{positional_encoding.1} parent=0 // pred_check_branch
    %10 = sbr.rel (0) target = $region5
  $region4: #{positional_encoding.1} parent=0 // pred_region
    _
  $region5: #{positional_encoding.1} parent=0 // pred_fallthru
    _
  // Predicated region
  $region6: #{positional_encoding.1} parent=0 // pred_check
    _
  $region7: #{positional_encoding.1} parent=0 // pred_check_branch
    %12 = sbr.rel (0) target = $region9
  $region8: #{positional_encoding.1} parent=0 // pred_region
    _
  $region9: #{positional_encoding.1} parent=0 // pred_fallthru
    _
  // Predicated region
  $region10: #{positional_encoding.1} parent=0 // pred_check
    _
  $region11: #{positional_encoding.1} parent=0 // pred_check_branch
    %14 = sbr.rel (0) target = $region13
  $region12: #{positional_encoding.1} parent=0 // pred_region
    _
  $region13: #{positional_encoding.1} parent=0 // pred_fallthru
    _
  %v15 = vld [vmem:[%s2] sm:$0xff]
  %17 = vrot.lane.b32.xlu0 %v15, 32
  %v18 = vpop.permute.xlu0 %17
  %vm20 = vcmask 261120
  %v21 = vsel %vm20, %v15, %v18
  %v22 = vld [vmem:[%s1] sm:$0xff]
  %v23 = vadd.f32 %v22, %v21
  %vm24 = vcmask 523264
  %25 = vst.msk [vmem:[%s3] sm:$0xff] %vm24, %v23
  // Predicated region
  $region14: #{positional_encoding.1} parent=0 // pred_check
    _
  $region15: #{positional_encoding.1} parent=0 // pred_check_branch
    %27 = sbr.rel (0) target = $region17
  $region16: #{positional_encoding.1} parent=0 // pred_region
    _
  $region17: #{positional_encoding.1} parent=0 // pred_fallthru
    _
  // Predicated region
  $region18: #{positional_encoding.1} parent=0 // pred_check
    _
  $region19: #{positional_encoding.1} parent=0 // pred_check_branch
    %29 = sbr.rel (0) target = $region21
  $region20: #{positional_encoding.1} parent=0 // pred_region
    _
  $region21: #{positional_encoding.1} parent=0 // pred_fallthru
    _

</llo_original>
